<compile_context>
chip_gen: v7x
topology: tpu7x:2x2x1
jax: 0.10.0
libtpu: 0.0.40
codegen_flags: <defaults>
</compile_context>

<pallas_src>
import jax
import jax.numpy as jnp
from jax import lax
from jax.experimental import pallas as pl
from jax.experimental.pallas import tpu as pltpu


# ---------------------------------------------------------------------------
# Kernels (batch on lanes; state streamed in its original (B, SD) layout)
# ---------------------------------------------------------------------------
def _hidden_act(x_ref, w1T_ref, b1_ref):
    # h^T = relu(W1^T @ x^T + b1): contract SD (dim 1) of w1T with SD (dim 1)
    # of the (tb, SD) state tile -> (H, tb).  Batch on lanes, no transpose op.
    h = lax.dot_general(
        w1T_ref[...], x_ref[...],
        dimension_numbers=(((1,), (1,)), ((), ())),
        preferred_element_type=jnp.float32)
    return jnp.maximum(h + b1_ref[...], 0.0)           # f32 (H, tb)


def _policy_discrete_kernel(x_ref, w1T_ref, b1_ref, w2T_ref, b2_ref, o_ref):
    h = _hidden_act(x_ref, w1T_ref, b1_ref)
    # logits^T = W2^T @ h^T + b2 : (A, H) @ (H, tb) -> (A, tb)
    logits = jnp.dot(w2T_ref[...], h.astype(w2T_ref.dtype),
                     preferred_element_type=jnp.float32) + b2_ref[...]
    # softmax over the action dim (sublane axis in this layout), exact f32
    m = jnp.max(logits, axis=0, keepdims=True)
    e = jnp.exp(logits - m)
    o_ref[...] = (e / jnp.sum(e, axis=0, keepdims=True)).astype(o_ref.dtype)


def _policy_continuous_fused_kernel(x_ref, w1T_ref, b1_ref, w2T_ref, b2_ref,
                                    mean_ref, std_ref):
    h = _hidden_act(x_ref, w1T_ref, b1_ref)
    # single (2A, H) @ (H, tb) matmul, then an ALIGNED sublane split (A % 8 == 0)
    out = jnp.dot(w2T_ref[...], h.astype(w2T_ref.dtype),
                  preferred_element_type=jnp.float32) + b2_ref[...]
    a = mean_ref.shape[0]
    mean_ref[...] = out[:a].astype(mean_ref.dtype)
    std_ref[...] = jnp.exp(out[a:]).astype(std_ref.dtype)


def _policy_continuous_split_kernel(x_ref, w1T_ref, b1_ref,
                                    w2mT_ref, b2m_ref, w2sT_ref, b2s_ref,
                                    mean_ref, std_ref):
    # used only when action_dim % 8 != 0 (avoids a misaligned sublane slice)
    h = _hidden_act(x_ref, w1T_ref, b1_ref)
    mean = jnp.dot(w2mT_ref[...], h.astype(w2mT_ref.dtype),
                   preferred_element_type=jnp.float32) + b2m_ref[...]
    log_std = jnp.dot(w2sT_ref[...], h.astype(w2sT_ref.dtype),
                      preferred_element_type=jnp.float32) + b2s_ref[...]
    mean_ref[...] = mean.astype(mean_ref.dtype)
    std_ref[...] = jnp.exp(log_std).astype(std_ref.dtype)


# ---------------------------------------------------------------------------
# Wrapper
# ---------------------------------------------------------------------------
def _round_down_128(x):
    return max((int(x) // 128) * 128, 128)


def _pick_batch_tile(b_padded, tile_b):
    """Streamed batch-tile size (lane dim of the kernel outputs)."""
    if b_padded <= 256:
        return b_padded                      # single tile, full extent
    tb = min(_round_down_128(tile_b), _round_down_128(b_padded))
    # keep >= 2 tiles so the "parallel" batch axis can shard across v7x's 2 TCs
    tb = min(tb, _round_down_128(pl.cdiv(b_padded, 2)))
    return tb


def _resident(arr):
    # whole (small) array, same block every grid step -> DMA'd once, stays in VMEM
    return pl.BlockSpec(arr.shape, lambda i: (0, 0))


def policy_network_forward(state, params, continuous=False, *,
                           tile_b=8192, input_dtype=None):
    """Pallas forward pass of PolicyNetwork.

    state : (B, state_dim), f32 or bf16.  Streaming dtype follows the state's
            dtype (pass bf16 from the producer to halve HBM traffic; an
            explicit input_dtype forces a cast, which is best fused upstream).
    params: dict with w1 (state_dim,16), b1 (1,16), w2 (16,out_dim),
            b2 (1,out_dim); out_dim = 2*action_dim if continuous else action_dim.
    """
    w1, b1, w2, b2 = params["w1"], params["b1"], params["w2"], params["b2"]
    B, state_dim = state.shape
    hidden = w1.shape[1]
    out_dim = w2.shape[1]

    mxu_dtype = state.dtype if input_dtype is None else jnp.dtype(input_dtype)
    if state.dtype != mxu_dtype:
        # TODO(synk): standalone cast is an extra HBM pass; fuse into the producer.
        state = state.astype(mxu_dtype)

    # small-batch path: pad the batch (lane) dim to 128 -> unmasked lane stores
    Bp = B
    if Bp < 128:
        state = jnp.pad(state, ((0, 128 - Bp), (0, 0)))
        Bp = 128

    tb = _pick_batch_tile(Bp, tile_b)
    grid = (pl.cdiv(Bp, tb),)
    cparams = pltpu.CompilerParams(dimension_semantics=("parallel",))

    # tiny resident weights (layer 1); biases stay f32 (column vectors -> lane bcast)
    w1T = jnp.transpose(w1).astype(mxu_dtype)              # (H, SD)
    b1c = jnp.reshape(b1, (hidden, 1)).astype(jnp.float32)  # (H, 1)

    x_spec = pl.BlockSpec((tb, state_dim), lambda i: (i, 0))
    in_bytes = jnp.dtype(mxu_dtype).itemsize
    w_bytes = (state_dim * hidden + hidden * out_dim) * in_bytes
    flops = 2 * Bp * (state_dim * hidden + hidden * out_dim)

    if continuous:
        action_dim = out_dim // 2
        cost = pl.CostEstimate(
            flops=flops,
            transcendentals=Bp * action_dim,
            bytes_accessed=Bp * state_dim * in_bytes
                           + 2 * Bp * action_dim * 4 + w_bytes)
        out_shape = (jax.ShapeDtypeStruct((action_dim, Bp), jnp.float32),
                     jax.ShapeDtypeStruct((action_dim, Bp), jnp.float32))
        out_specs = (pl.BlockSpec((action_dim, tb), lambda i: (0, i)),
                     pl.BlockSpec((action_dim, tb), lambda i: (0, i)))

        if action_dim % 8 == 0:
            # fused head: one (2A, H) matmul + aligned sublane split in-kernel
            w2T = jnp.transpose(w2).astype(mxu_dtype)                    # (2A, H)
            b2c = jnp.reshape(b2, (out_dim, 1)).astype(jnp.float32)      # (2A, 1)
            meanT, stdT = pl.pallas_call(
                _policy_continuous_fused_kernel,
                grid=grid,
                in_specs=[x_spec, _resident(w1T), _resident(b1c),
                          _resident(w2T), _resident(b2c)],
                out_specs=out_specs,
                out_shape=out_shape,
                compiler_params=cparams,
                cost_estimate=cost,
            )(state, w1T, b1c, w2T, b2c)
        else:
            # non-8-aligned action dim: pre-split heads (no misaligned slice)
            w2mT = jnp.transpose(w2[:, :action_dim]).astype(mxu_dtype)   # (A, H)
            w2sT = jnp.transpose(w2[:, action_dim:]).astype(mxu_dtype)   # (A, H)
            b2m = jnp.reshape(b2[:, :action_dim], (action_dim, 1)).astype(jnp.float32)
            b2s = jnp.reshape(b2[:, action_dim:], (action_dim, 1)).astype(jnp.float32)
            meanT, stdT = pl.pallas_call(
                _policy_continuous_split_kernel,
                grid=grid,
                in_specs=[x_spec, _resident(w1T), _resident(b1c),
                          _resident(w2mT), _resident(b2m),
                          _resident(w2sT), _resident(b2s)],
                out_specs=out_specs,
                out_shape=out_shape,
                compiler_params=cparams,
                cost_estimate=cost,
            )(state, w1T, b1c, w2mT, b2m, w2sT, b2s)
        return jnp.transpose(meanT)[:B], jnp.transpose(stdT)[:B]

    else:
        cost = pl.CostEstimate(
            flops=flops,
            transcendentals=Bp * out_dim,
            bytes_accessed=Bp * state_dim * in_bytes
                           + Bp * out_dim * 4 + w_bytes)
        w2T = jnp.transpose(w2).astype(mxu_dtype)                   # (A, H)
        b2c = jnp.reshape(b2, (out_dim, 1)).astype(jnp.float32)     # (A, 1)
        probsT = pl.pallas_call(
            _policy_discrete_kernel,
            grid=grid,
            in_specs=[x_spec, _resident(w1T), _resident(b1c),
                      _resident(w2T), _resident(b2c)],
            out_specs=pl.BlockSpec((out_dim, tb), lambda i: (0, i)),
            out_shape=jax.ShapeDtypeStruct((out_dim, Bp), jnp.float32),
            compiler_params=cparams,
            cost_estimate=cost,
        )(state, w1T, b1c, w2T, b2c)
        return jnp.transpose(probsT)[:B]


# ---------------------------------------------------------------------------
# Params + pure-JAX reference
# ---------------------------------------------------------------------------
def init_params(key, state_dim, action_dim, continuous=False):
    """Deterministic synthetic parameters (shapes match the nn.Linear layers)."""
    hidden = 16
    out_dim = 2 * action_dim if continuous else action_dim
    k1, k2, k3, k4 = jax.random.split(key, 4)
    s1 = 1.0 / jnp.sqrt(state_dim)
    s2 = 1.0 / jnp.sqrt(hidden)
    return {
        "w1": jax.random.uniform(k1, (state_dim, hidden), jnp.float32, -s1, s1),
        "b1": jax.random.uniform(k2, (1, hidden), jnp.float32, -s1, s1),
        "w2": jax.random.uniform(k3, (hidden, out_dim), jnp.float32, -s2, s2),
        "b2": jax.random.uniform(k4, (1, out_dim), jnp.float32, -s2, s2),
    }


def _ref_forward(state, params, continuous=False):
    state = state.astype(jnp.float32)
    h = jnp.maximum(state @ params["w1"] + params["b1"], 0.0)
    out = h @ params["w2"] + params["b2"]
    if continuous:
        a = out.shape[-1] // 2
        return out[:, :a], jnp.exp(out[:, a:])
    return jax.nn.softmax(out, axis=-1)


if __name__ == "__main__":
    key = jax.random.PRNGKey(0)
    k_state, k_p1, k_p2, k_p3, k_big = jax.random.split(key, 5)

    B, state_dim, action_dim = 8, 32, 8
    state = jax.random.normal(k_state, (B, state_dim), jnp.float32)

    # ----- discrete path (softmax policy), small batch (padded to 128 lanes) -----
    params_d = init_params(k_p1, state_dim, action_dim, continuous=False)
    probs = jax.block_until_ready(
        policy_network_forward(state, params_d, continuous=False))
    ref_probs = _ref_forward(state, params_d, continuous=False)
    assert probs.shape == (B, action_dim)
    assert jnp.allclose(probs, ref_probs, atol=1e-5), "discrete path mismatch"

    # ----- continuous path, fused head (action_dim % 8 == 0) -----
    params_c = init_params(k_p2, state_dim, action_dim, continuous=True)
    mean, std = policy_network_forward(state, params_c, continuous=True)
    mean = jax.block_until_ready(mean)
    std = jax.block_until_ready(std)
    ref_mean, ref_std = _ref_forward(state, params_c, continuous=True)
    assert mean.shape == (B, action_dim) and std.shape == (B, action_dim)
    assert jnp.allclose(mean, ref_mean, atol=1e-4, rtol=1e-4), "mean mismatch"
    assert jnp.allclose(std, ref_std, atol=1e-4, rtol=1e-4), "std mismatch"

    # ----- continuous path, split head (action_dim % 8 != 0) -----
    a_odd = 5
    params_o = init_params(k_p3, state_dim, a_odd, continuous=True)
    mean_o, std_o = policy_network_forward(state, params_o, continuous=True)
    mean_o = jax.block_until_ready(mean_o)
    std_o = jax.block_until_ready(std_o)
    ref_mean_o, ref_std_o = _ref_forward(state, params_o, continuous=True)
    assert mean_o.shape == (B, a_odd) and std_o.shape == (B, a_odd)
    assert jnp.allclose(mean_o, ref_mean_o, atol=1e-4, rtol=1e-4), "split mean mismatch"
    assert jnp.allclose(std_o, ref_std_o, atol=1e-4, rtol=1e-4), "split std mismatch"

    # ----- multi-tile batch grid (weights resident, state streamed, >=2 tiles) -----
    Bb = 1024
    state_big = jax.random.normal(k_big, (Bb, state_dim), jnp.float32)
    probs_big = jax.block_until_ready(
        policy_network_forward(state_big, params_d, continuous=False))
    ref_big = _ref_forward(state_big, params_d, continuous=False)
    assert probs_big.shape == (Bb, action_dim)
    assert jnp.allclose(probs_big, ref_big, atol=1e-5), "batch-grid mismatch"

    # ----- bf16 streaming (producer-side cast; halves HBM traffic on v5e) -----
    probs_bf16 = jax.block_until_ready(
        policy_network_forward(state_big.astype(jnp.bfloat16), params_d,
                               continuous=False))
    assert jnp.allclose(probs_bf16, ref_big, atol=2e-2), "bf16 path mismatch"

    print("KERNEL_OK")
</pallas_src>

<mosaic_0001>
module attributes {stable_mosaic.version = 11 : i64} {
  func.func @_policy_discrete_kernel(%arg0: i32, %arg1: memref<128x32xf32, #tpu.memory_space<vmem>>, %arg2: memref<16x32xf32, #tpu.memory_space<vmem>>, %arg3: memref<16x1xf32, #tpu.memory_space<vmem>>, %arg4: memref<8x16xf32, #tpu.memory_space<vmem>>, %arg5: memref<8x1xf32, #tpu.memory_space<vmem>>, %arg6: memref<8x128xf32, #tpu.memory_space<vmem>>) attributes {dimension_semantics = [#tpu.dimension_semantics<parallel>], iteration_bounds = array<i64: 1>, scalar_prefetch = 0 : i64, scratch_operands = 0 : i64, tpu.core_type = #tpu.core_type<tc>, window_params = [{transform_indices = @transform_0, window_bounds = array<i64: 128, 32>}, {pipeline_mode = #tpu.pipeline_mode<synchronous>, transform_indices = @transform_1, window_bounds = array<i64: 16, 32>}, {pipeline_mode = #tpu.pipeline_mode<synchronous>, transform_indices = @transform_2, window_bounds = array<i64: 16, 1>}, {pipeline_mode = #tpu.pipeline_mode<synchronous>, transform_indices = @transform_3, window_bounds = array<i64: 8, 16>}, {pipeline_mode = #tpu.pipeline_mode<synchronous>, transform_indices = @transform_4, window_bounds = array<i64: 8, 1>}, {transform_indices = @transform_5, window_bounds = array<i64: 8, 128>}]} {
    %c0 = arith.constant 0 : index
    %c0_0 = arith.constant 0 : index
    %0 = vector.load %arg2[%c0, %c0_0] : memref<16x32xf32, #tpu.memory_space<vmem>>, vector<16x32xf32>
    %c0_1 = arith.constant 0 : index
    %c0_2 = arith.constant 0 : index
    %1 = vector.load %arg1[%c0_1, %c0_2] : memref<128x32xf32, #tpu.memory_space<vmem>>, vector<128x32xf32>
    %cst = arith.constant dense<0.000000e+00> : vector<16x128xf32>
    %2 = tpu.matmul %0, %1, %cst {dimension_numbers = #tpu.dot_dimension_numbers<[1], [1], [0], [0], [0, 0, 1, 0], [], []>} : vector<16x32xf32>, vector<128x32xf32>, vector<16x128xf32> -> vector<16x128xf32>
    %c0_3 = arith.constant 0 : index
    %c0_4 = arith.constant 0 : index
    %3 = vector.load %arg3[%c0_3, %c0_4] : memref<16x1xf32, #tpu.memory_space<vmem>>, vector<16x1xf32>
    %4 = vector.broadcast %3 : vector<16x1xf32> to vector<16x128xf32>
    %5 = arith.addf %2, %4 : vector<16x128xf32>
    %cst_5 = arith.constant 0.000000e+00 : f32
    %6 = vector.broadcast %cst_5 : f32 to vector<16x128xf32>
    %7 = arith.maximumf %5, %6 : vector<16x128xf32>
    %c0_6 = arith.constant 0 : index
    %c0_7 = arith.constant 0 : index
    %8 = vector.load %arg4[%c0_6, %c0_7] : memref<8x16xf32, #tpu.memory_space<vmem>>, vector<8x16xf32>
    %cst_8 = arith.constant dense<0.000000e+00> : vector<8x128xf32>
    %9 = tpu.matmul %8, %7, %cst_8 {dimension_numbers = #tpu.dot_dimension_numbers<[1], [0], [0], [1], [0, 0, 1, 1], [], []>} : vector<8x16xf32>, vector<16x128xf32>, vector<8x128xf32> -> vector<8x128xf32>
    %c0_9 = arith.constant 0 : index
    %c0_10 = arith.constant 0 : index
    %10 = vector.load %arg5[%c0_9, %c0_10] : memref<8x1xf32, #tpu.memory_space<vmem>>, vector<8x1xf32>
    %11 = vector.broadcast %10 : vector<8x1xf32> to vector<8x128xf32>
    %12 = arith.addf %9, %11 : vector<8x128xf32>
    %cst_11 = arith.constant dense<0xFF800000> : vector<128xf32>
    %13 = vector.multi_reduction <maximumf>, %12, %cst_11 [0] : vector<8x128xf32> to vector<128xf32>
    %14 = vector.shape_cast %13 : vector<128xf32> to vector<1x128xf32>
    %15 = vector.broadcast %14 : vector<1x128xf32> to vector<8x128xf32>
    %16 = arith.subf %12, %15 : vector<8x128xf32>
    %17 = math.exp %16 : vector<8x128xf32>
    %cst_12 = arith.constant dense<0.000000e+00> : vector<128xf32>
    %18 = vector.multi_reduction <add>, %17, %cst_12 [0] : vector<8x128xf32> to vector<128xf32>
    %19 = vector.shape_cast %18 : vector<128xf32> to vector<1x128xf32>
    %20 = vector.broadcast %19 : vector<1x128xf32> to vector<8x128xf32>
    %21 = arith.divf %17, %20 : vector<8x128xf32>
    %c0_13 = arith.constant 0 : index
    %c0_14 = arith.constant 0 : index
    %22 = vector.load %arg6[%c0_13, %c0_14] : memref<8x128xf32, #tpu.memory_space<vmem>>, vector<8x128xf32>
    tpu.vector_store %arg6[%c0_13, %c0_14], %21 {strides = array<i32>} : memref<8x128xf32, #tpu.memory_space<vmem>>, vector<8x128xf32>,
    return
  }
  func.func @transform_0(%arg0: i32) -> (i32, i32) {
    %c0_i32 = arith.constant 0 : i32
    %c0_i32_0 = arith.constant 0 : i32
    return %arg0, %c0_i32 : i32, i32
  }
  func.func @transform_1(%arg0: i32) -> (i32, i32) {
    %c0_i32 = arith.constant 0 : i32
    %c0_i32_0 = arith.constant 0 : i32
    %c0_i32_1 = arith.constant 0 : i32
    return %c0_i32, %c0_i32_0 : i32, i32
  }
  func.func @transform_2(%arg0: i32) -> (i32, i32) {
    %c0_i32 = arith.constant 0 : i32
    %c0_i32_0 = arith.constant 0 : i32
    %c0_i32_1 = arith.constant 0 : i32
    return %c0_i32, %c0_i32_0 : i32, i32
  }
  func.func @transform_3(%arg0: i32) -> (i32, i32) {
    %c0_i32 = arith.constant 0 : i32
    %c0_i32_0 = arith.constant 0 : i32
    %c0_i32_1 = arith.constant 0 : i32
    return %c0_i32, %c0_i32_0 : i32, i32
  }
  func.func @transform_4(%arg0: i32) -> (i32, i32) {
    %c0_i32 = arith.constant 0 : i32
    %c0_i32_0 = arith.constant 0 : i32
    %c0_i32_1 = arith.constant 0 : i32
    return %c0_i32, %c0_i32_0 : i32, i32
  }
  func.func @transform_5(%arg0: i32) -> (i32, i32) {
    %c0_i32 = arith.constant 0 : i32
    %c0_i32_0 = arith.constant 0 : i32
    return %c0_i32, %arg0 : i32, i32
  }
}

</mosaic_0001>

<llo_original>
// kernel: tpu_custom_call.1
$region0: #{tpu_custom_call.1}
  #allocation0 [shape = 'u32[]', space=smem, size = 0x4, offset = 0x4, fixed_abs, tag = 'smem constant byte address 0x4 - core index']
  #allocation1 [shape = 'u32[144,128]{1,0:T(1,128)}', space=vmem, size = 0x12000, scoped, tag = 'internal scratch']
  %s0 = inlined_call_operand.vmem [shape: f32[128,32], index: 0, kind: input, shape index: {}]
  %s1 = inlined_call_operand.vmem [shape: f32[16,32], index: 1, kind: input, shape index: {}]
  %s2 = inlined_call_operand.vmem [shape: f32[16,1], index: 2, kind: input, shape index: {}]
  %s3 = inlined_call_operand.vmem [shape: f32[8,16], index: 3, kind: input, shape index: {}]
  %s4 = inlined_call_operand.vmem [shape: f32[8,1], index: 4, kind: input, shape index: {}]
  %s5 = inlined_call_operand.hbm [shape: f32[8,128], index: 5, kind: output, shape index: {}]
  %s6 = sld [smem:[#allocation0]]
  $region30: #{tpu_custom_call.1} parent=0
    _
  %s8 = ssub.s32 1, %s6
  %s9 = scalar_select 0, %s8, %s6
  $region1: #{tpu_custom_call.1} parent=0
    #allocation2 [shape = 'u8[4096]{0}', space=vmem, size = 0x1000, scoped, tag = 'output window, operand 0, single buffered']
    #allocation3 [shape = 's32[1]{0}', space=sflag, size = 0x4, scoped, tag = 'scoped memory for tpu_custom_call.1']
    %10 = vsyncpa [#allocation3], 0
    // Predicated region
    $region2: #{tpu_custom_call.1} parent=1 // pred_check
      _
    $region3: #{tpu_custom_call.1} parent=1 // pred_check_branch
      %12 = sbr.rel (0) target = $region5
    $region4: #{tpu_custom_call.1} parent=1 // pred_region
      _
    $region5: #{tpu_custom_call.1} parent=1 // pred_fallthru
      _
    // Predicated region
    $region6: #{tpu_custom_call.1} parent=1 // pred_check
      _
    $region7: #{tpu_custom_call.1} parent=1 // pred_check_branch
      %14 = sbr.rel (0) target = $region9
    $region8: #{tpu_custom_call.1} parent=1 // pred_region
      _
    $region9: #{tpu_custom_call.1} parent=1 // pred_fallthru
      _
    // Predicated region
    $region10: #{tpu_custom_call.1} parent=1 // pred_check
      _
    $region11: #{tpu_custom_call.1} parent=1 // pred_check_branch
      %16 = sbr.rel (0) target = $region13
    $region12: #{tpu_custom_call.1} parent=1 // pred_region
      _
    $region13: #{tpu_custom_call.1} parent=1 // pred_fallthru
      _
    // Predicated region
    $region14: #{tpu_custom_call.1} parent=1 // pred_check
      _
    $region15: #{tpu_custom_call.1} parent=1 // pred_check_branch
      %18 = sbr.rel (0) target = $region17
    $region16: #{tpu_custom_call.1} parent=1 // pred_region
      _
    $region17: #{tpu_custom_call.1} parent=1 // pred_fallthru
      _
    // Predicated region
    $region18: #{tpu_custom_call.1} parent=1 // pred_check
      _
    $region19: #{tpu_custom_call.1} parent=1 // pred_check_branch
      %20 = sbr.rel (0) target = $region21
    $region20: #{tpu_custom_call.1} parent=1 // pred_region
      _
    $region21: #{tpu_custom_call.1} parent=1 // pred_fallthru
      _
    %v21 = vld [vmem:[%s1] sm:$0xff]
    %v22 = vld [vmem:[%s1 + $0x8] sm:$0xff]
    %v23 = vld [vmem:[%s0] sm:$0xff]
    %v24 = vld [vmem:[%s0 + $0x8] sm:$0xff]
    %v25 = vld [vmem:[%s0 + $0x10] sm:$0xff]
    %v26 = vld [vmem:[%s0 + $0x18] sm:$0xff]
    %v27 = vld [vmem:[%s0 + $0x20] sm:$0xff]
    %v28 = vld [vmem:[%s0 + $0x28] sm:$0xff]
    %v29 = vld [vmem:[%s0 + $0x30] sm:$0xff]
    %v30 = vld [vmem:[%s0 + $0x38] sm:$0xff]
    %v31 = vld [vmem:[%s0 + $0x40] sm:$0xff]
    %v32 = vld [vmem:[%s0 + $0x48] sm:$0xff]
    %v33 = vld [vmem:[%s0 + $0x50] sm:$0xff]
    %v34 = vld [vmem:[%s0 + $0x58] sm:$0xff]
    %v35 = vld [vmem:[%s0 + $0x60] sm:$0xff]
    %v36 = vld [vmem:[%s0 + $0x68] sm:$0xff]
    %v37 = vld [vmem:[%s0 + $0x70] sm:$0xff]
    %v38 = vld [vmem:[%s0 + $0x78] sm:$0xff]
    %v39 = vld [vmem:[%s2] sm:$0xff]
    %v40 = vld [vmem:[%s2 + $0x8] sm:$0xff]
    %42 = vset.pattern.permute.xlu0 0
    %43 = vperm.xlu0 %42, %v39
    %v44 = vpop.permute.xlu0 %43
    %47 = vset.pattern.permute.xlu0 0
    %48 = vperm.xlu0 %47, %v40
    %v49 = vpop.permute.xlu0 %48
    %vm51 = vcmask 261120
    %v53 = vsel %vm51, %v21, 0
    %v56 = vsel %vm51, %v22, 0
    %v59 = vsel %vm51, %v23, 0
    %v62 = vsel %vm51, %v24, 0
    %v65 = vsel %vm51, %v25, 0
    %v68 = vsel %vm51, %v26, 0
    %v71 = vsel %vm51, %v27, 0
    %v74 = vsel %vm51, %v28, 0
    %v77 = vsel %vm51, %v29, 0
    %v80 = vsel %vm51, %v30, 0
    %v83 = vsel %vm51, %v31, 0
    %v86 = vsel %vm51, %v32, 0
    %v89 = vsel %vm51, %v33, 0
    %v92 = vsel %vm51, %v34, 0
    %v95 = vsel %vm51, %v35, 0
    %v98 = vsel %vm51, %v36, 0
    %v101 = vsel %vm51, %v37, 0
    %v104 = vsel %vm51, %v38, 0
    %106 = vmatprep.subr.mxu0 0.0
    %107 = vmatpush1.xpose.msra.mxu0 %v59
    %108 = vmatprep.subr.mxu0 0.0
    %109 = vmatpush1.xpose.msra.mxu0 %v62
    %110 = vmatprep.subr.mxu0 0.0
    %111 = vmatpush1.xpose.msra.mxu0 %v65
    %112 = vmatprep.subr.mxu0 0.0
    %113 = vmatpush1.xpose.msra.mxu0 %v68
    %114 = vmatprep.subr.mxu0 0.0
    %115 = vmatpush1.xpose.msra.mxu0 %v71
    %116 = vmatprep.subr.mxu0 0.0
    %117 = vmatpush1.xpose.msra.mxu0 %v74
    %118 = vmatprep.subr.mxu0 0.0
    %119 = vmatpush1.xpose.msra.mxu0 %v77
    %120 = vmatprep.subr.mxu0 0.0
    %121 = vmatpush1.xpose.msra.mxu0 %v80
    %122 = vmatprep.subr.mxu0 0.0
    %123 = vmatpush1.xpose.msra.mxu0 %v83
    %124 = vmatprep.subr.mxu0 0.0
    %125 = vmatpush1.xpose.msra.mxu0 %v86
    %126 = vmatprep.subr.mxu0 0.0
    %127 = vmatpush1.xpose.msra.mxu0 %v89
    %128 = vmatprep.subr.mxu0 0.0
    %129 = vmatpush1.xpose.msra.mxu0 %v92
    %130 = vmatprep.subr.mxu0 0.0
    %131 = vmatpush1.xpose.msra.mxu0 %v95
    %132 = vmatprep.subr.mxu0 0.0
    %133 = vmatpush1.xpose.msra.mxu0 %v98
    %134 = vmatprep.subr.mxu0 0.0
    %135 = vmatpush1.xpose.msra.mxu0 %v101
    %136 = vmatprep.subr.mxu0 0.0
    %137 = vmatpush1.xpose.msra.mxu0 %v104
    %138 = vmatprep.subr.mxu0 0.0
    %139 = vmatpush1.xpose.msra.mxu0 0.0
    %140 = vmatprep.subr.mxu0 0.0
    %141 = vmatpush1.xpose.msra.mxu0 0.0
    %142 = vmatprep.subr.mxu0 0.0
    %143 = vmatpush1.xpose.msra.mxu0 0.0
    %144 = vmatprep.subr.mxu0 0.0
    %145 = vmatpush1.xpose.msra.mxu0 0.0
    %146 = vmatprep.subr.mxu0 0.0
    %147 = vmatpush1.xpose.msra.mxu0 0.0
    %148 = vmatprep.subr.mxu0 0.0
    %149 = vmatpush1.xpose.msra.mxu0 0.0
    %150 = vmatprep.subr.mxu0 0.0
    %151 = vmatpush1.xpose.msra.mxu0 0.0
    %152 = vmatprep.subr.mxu0 0.0
    %153 = vmatpush1.xpose.msra.mxu0 0.0
    %154 = vmatprep.subr.mxu0 0.0
    %155 = vmatpush1.xpose.msra.mxu0 0.0
    %156 = vmatprep.subr.mxu0 0.0
    %157 = vmatpush1.xpose.msra.mxu0 0.0
    %158 = vmatprep.subr.mxu0 0.0
    %159 = vmatpush1.xpose.msra.mxu0 0.0
    %160 = vmatprep.subr.mxu0 0.0
    %161 = vmatpush1.xpose.msra.mxu0 0.0
    %162 = vmatprep.subr.mxu0 0.0
    %163 = vmatpush1.xpose.msra.mxu0 0.0
    %164 = vmatprep.subr.mxu0 0.0
    %165 = vmatpush1.xpose.msra.mxu0 0.0
    %166 = vmatprep.subr.mxu0 0.0
    %167 = vmatpush1.xpose.msra.mxu0 0.0
    %168 = vmatprep.subr.mxu0 0.0
    %169 = vmatpush1.xpose.msra.mxu0 0.0
    %170 = vmatprep.mubr.f32.mxu0 0.0
    %171 = vmatmul.mubr.f32.gmra.mrb[0].mxu0 %v53
    %v172 = vpop.f32.mrb[0].mxu0
    %v173 = vadd.f32 %v44, %v172
    %v174 = vpop.f32.mrb[0].mxu0
    %175 = vmatprep.mubr.f32.mxu0 0.0
    %176 = vmatmul.mubr.f32.gmra.mrb[0].mxu0 %v56
    %v177 = vpop.f32.mrb[0].mxu0
    %v178 = vadd.f32 %v49, %v177
    %v179 = vpop.f32.mrb[0].mxu0
    %180 = vdwg.mxu0
    %v181 = vmax.f32 %v173, 0.0
    %v182 = vmax.f32 %v178, 0.0
    %v183 = vld [vmem:[%s3] sm:$0xff]
    %v184 = vld [vmem:[%s4] sm:$0xff]
    %186 = vset.pattern.permute.xlu0 0
    %187 = vperm.xlu0 %186, %v184
    %v188 = vpop.permute.xlu0 %187
    %vm190 = vcmask 130048
    %v192 = vsel %vm190, %v183, 0
    %194 = vmatprep.subr.mxu0 0.0
    %195 = vmatpush1.msra.mxu0 %v181
    %196 = vmatprep.subr.mxu0 0.0
    %197 = vmatpush1.msra.mxu0 %v182
    %198 = vmatprep.subr.mxu0 0.0
    %199 = vmatpush1.msra.mxu0 0.0
    %200 = vmatprep.subr.mxu0 0.0
    %201 = vmatpush1.msra.mxu0 0.0
    %202 = vmatprep.subr.mxu0 0.0
    %203 = vmatpush1.msra.mxu0 0.0
    %204 = vmatprep.subr.mxu0 0.0
    %205 = vmatpush1.msra.mxu0 0.0
    %206 = vmatprep.subr.mxu0 0.0
    %207 = vmatpush1.msra.mxu0 0.0
    %208 = vmatprep.subr.mxu0 0.0
    %209 = vmatpush1.msra.mxu0 0.0
    %210 = vmatprep.subr.mxu0 0.0
    %211 = vmatpush1.msra.mxu0 0.0
    %212 = vmatprep.subr.mxu0 0.0
    %213 = vmatpush1.msra.mxu0 0.0
    %214 = vmatprep.subr.mxu0 0.0
    %215 = vmatpush1.msra.mxu0 0.0
    %216 = vmatprep.subr.mxu0 0.0
    %217 = vmatpush1.msra.mxu0 0.0
    %218 = vmatprep.subr.mxu0 0.0
    %219 = vmatpush1.msra.mxu0 0.0
    %220 = vmatprep.subr.mxu0 0.0
    %221 = vmatpush1.msra.mxu0 0.0
    %222 = vmatprep.subr.mxu0 0.0
    %223 = vmatpush1.msra.mxu0 0.0
    %224 = vmatprep.subr.mxu0 0.0
    %225 = vmatpush1.msra.mxu0 0.0
    %226 = vmatprep.subr.mxu0 0.0
    %227 = vmatpush1.msra.mxu0 0.0
    %228 = vmatprep.subr.mxu0 0.0
    %229 = vmatpush1.msra.mxu0 0.0
    %230 = vmatprep.subr.mxu0 0.0
    %231 = vmatpush1.msra.mxu0 0.0
    %232 = vmatprep.subr.mxu0 0.0
    %233 = vmatpush1.msra.mxu0 0.0
    %234 = vmatprep.subr.mxu0 0.0
    %235 = vmatpush1.msra.mxu0 0.0
    %236 = vmatprep.subr.mxu0 0.0
    %237 = vmatpush1.msra.mxu0 0.0
    %238 = vmatprep.subr.mxu0 0.0
    %239 = vmatpush1.msra.mxu0 0.0
    %240 = vmatprep.subr.mxu0 0.0
    %241 = vmatpush1.msra.mxu0 0.0
    %242 = vmatprep.subr.mxu0 0.0
    %243 = vmatpush1.msra.mxu0 0.0
    %244 = vmatprep.subr.mxu0 0.0
    %245 = vmatpush1.msra.mxu0 0.0
    %246 = vmatprep.subr.mxu0 0.0
    %247 = vmatpush1.msra.mxu0 0.0
    %248 = vmatprep.subr.mxu0 0.0
    %249 = vmatpush1.msra.mxu0 0.0
    %250 = vmatprep.subr.mxu0 0.0
    %251 = vmatpush1.msra.mxu0 0.0
    %252 = vmatprep.subr.mxu0 0.0
    %253 = vmatpush1.msra.mxu0 0.0
    %254 = vmatprep.subr.mxu0 0.0
    %255 = vmatpush1.msra.mxu0 0.0
    %256 = vmatprep.subr.mxu0 0.0
    %257 = vmatpush1.msra.mxu0 0.0
    %258 = vmatprep.mubr.f32.mxu0 0.0
    %259 = vmatmul.mubr.f32.gmra.mrb[0].mxu0 %v192
    %v260 = vpop.f32.mrb[0].mxu0
    %v261 = vadd.f32 %v188, %v260
    %v262 = vpop.f32.mrb[0].mxu0
    %263 = vdwg.mxu0
    %v264 = vrot.slane %v261, 4
    %v265 = vmax.f32 %v261, %v264
    %v266 = vrot.slane %v265, 2
    %v267 = vmax.f32 %v265, %v266
    %v268 = vrot.slane %v267, 1
    %v269 = vmax.f32 %v267, %v268
    %v270 = vsub.f32 %v261, %v269
    %v271 = vmul.f32 %v270, 1.442695
    %v272 = vpow.pop %v271
    %v273 = vrot.slane %v272, 4
    %v274 = vadd.f32 %v272, %v273
    %v275 = vrot.slane %v274, 2
    %v276 = vadd.f32 %v274, %v275
    %v277 = vrot.slane %v276, 1
    %v278 = vadd.f32 %v276, %v277
    %v279 = vrcp.pop %v278
    %v280 = vmul.f32 %v272, %v279
    %281 = vst [vmem:[#allocation2] sm:$0xff] %v280
    // Predicated region
    $region22: #{tpu_custom_call.1} parent=1 // pred_check
      _
    $region23: #{tpu_custom_call.1} parent=1 // pred_check_branch
      %283 = sbr.rel (0) target = $region25
    $region24: #{tpu_custom_call.1} parent=1 // pred_region
      %s285 = ssub.s32 128, 128
      %286 = vsyncadd [#allocation3], %s285
      %s288 = sshll.u32 [#allocation2], 4
      %s289 = int_to_ptr.vmem [resolvable:$true] %s288
      %291 = dma.vmem_to_hbm [thread:$0]  %s289, 128, %s5, [#allocation3]
    $region25: #{tpu_custom_call.1} parent=1 // pred_fallthru
      _
    // Predicated region
    $region26: #{tpu_custom_call.1} parent=1 // pred_check
      _
    $region27: #{tpu_custom_call.1} parent=1 // pred_check_branch
      %293 = sbr.rel (0) target = $region29
    $region28: #{tpu_custom_call.1} parent=1 // pred_region
      %294 = dma.done [#allocation3], 128
    $region29: #{tpu_custom_call.1} parent=1 // pred_fallthru
      _
    %295 = vsyncpa [#allocation3], 1

</llo_original>
